<compile_context>
chip_gen: v5e
topology: v5e:2x2
jax: 0.10.0
libtpu: 0.0.40
codegen_flags: <defaults>
</compile_context>

<pallas_src>
import functools

import jax
import jax.numpy as jnp
from jax import lax
from jax.experimental import pallas as pl
from jax.experimental.pallas import tpu as pltpu

LANES = 128


def _ssm_block_kernel(x_ref, w_ref, b_ref, o_ref, *, cout):
    # x_ref: (1, M, K)    bf16  im2col rows (K = 9*Cin) for this (batch, H-tile).
    # w_ref: (K, Cp)      bf16  BN-scale-folded weights, Cout zero-padded to Cp = 128.
    # b_ref: (1, Cp)      f32   folded BN bias (zero in padded lanes).
    # o_ref: (1, M, cout) bf16  only the real output channels are stored.
    #
    # One MXU matmul per tile: K = 9*Cin (vs 9 matmuls of K = Cin before), f32
    # accumulation, no output read-modify-write.
    acc = jnp.dot(x_ref[0], w_ref[...], preferred_element_type=jnp.float32)   # (M, Cp)
    y = jnp.maximum(acc + b_ref[...], 0.0)
    # Store only the real channels as bf16: HBM writeback is M*cout, not M*128.
    o_ref[0] = y[:, :cout].astype(o_ref.dtype)


def _choose_tile_h(H, W, K, Cout, N, vmem_budget):
    """Largest divisor of H whose double-buffered in/out blocks fit the VMEM budget."""
    best = 1
    for th in range(1, H + 1):
        if H % th:
            continue
        if N == 1 and th == H and H > 1:
            # Keep the parallel grid axis >= 2 so both v7x TensorCores get work.
            continue
        # 2x double-buffered bf16 input + output blocks per grid step.
        need = 2 * th * W * K * 2 + 2 * th * W * Cout * 2
        if need <= vmem_budget // 2:
            best = th
    return best


def ssm_block_forward(x_nchw, w_oihw, gamma, beta, running_mean, running_var, eps=1e-5):
    """SSM_Block.forward: Conv3x3(pad=1, no bias) -> BatchNorm2d(eval) -> ReLU.

    x_nchw: [N, Cin, H, W] float32 (PyTorch layout). Returns [N, Cout, H, W] f32.
    """
    N, Cin, H, W = x_nchw.shape
    Cout = w_oihw.shape[0]
    K = 9 * Cin                                            # im2col contraction depth
    Cp = ((Cout + LANES - 1) // LANES) * LANES             # MXU RHS lane padding only

    # ---- VMEM budget: cap at 0.8x physical (v7x: 64 MiB/TC; v5e/v6e: 128 MiB).
    try:
        vmem_cap = int(pltpu.get_tpu_info().vmem_capacity_bytes)
    except Exception:
        vmem_cap = 64 * 2**20
    vmem_budget = int(0.8 * vmem_cap)

    TH = _choose_tile_h(H, W, K, Cout, N, vmem_budget)
    n_th = H // TH
    G = N * n_th                                           # batch x H-tiles, "parallel"
    M = TH * W                                             # matmul rows per tile

    # ---- BN folding (eval mode): conv(x, w)*scale + bias  ->  conv(x, w*scale) + bias.
    scale = gamma / jnp.sqrt(running_var + eps)                       # (Cout,)
    bias = (beta - running_mean * scale).astype(jnp.float32)          # (Cout,)
    # (O,I,KH,KW) -> (KH,KW,I,O) -> (9*Cin, Cout); row index (kh*3+kw)*Cin + i matches
    # the im2col tap ordering built below.
    w_mat = (jnp.transpose(w_oihw, (2, 3, 1, 0)) * scale[None, None, None, :]).reshape(K, Cout)
    w_pad = (jnp.zeros((K, Cp), jnp.float32).at[:, :Cout].set(w_mat)).astype(jnp.bfloat16)
    b_pad = jnp.zeros((1, Cp), jnp.float32).at[0, :Cout].set(bias)

    # ---- layout plumbing: NCHW -> NHWC, spatial pad, bf16, im2col (taps into lanes).
    # TODO(synk): accept NHWC/bf16 activations directly to drop these full-tensor passes.
    x_nhwc = jnp.transpose(x_nchw, (0, 2, 3, 1))                      # (N, H, W, Cin)
    x_pad = jnp.pad(x_nhwc, ((0, 0), (1, 1), (1, 1), (0, 0))).astype(jnp.bfloat16)
    cols = [x_pad[:, kh:kh + H, kw:kw + W, :] for kh in range(3) for kw in range(3)]
    x_cols = jnp.concatenate(cols, axis=-1)                           # (N, H, W, 9*Cin)
    x_cols = x_cols.reshape(G, M, K)                                  # no halo needed

    # VMEM limit: double-buffered in/out blocks + resident weights/bias + headroom,
    # never above 0.8x physical VMEM.
    x_blk = M * K * 2
    o_blk = M * Cout * 2
    w_blk = K * Cp * 2 + Cp * 4
    vmem_limit = int(min(vmem_budget,
                         max(8 * 2**20, 4 * (x_blk + o_blk) + 4 * w_blk + 2 * 2**20)))

    kernel = functools.partial(_ssm_block_kernel, cout=Cout)
    out = pl.pallas_call(
        kernel,
        out_shape=jax.ShapeDtypeStruct((G, M, Cout), jnp.bfloat16),
        grid_spec=pltpu.PrefetchScalarGridSpec(
            num_scalar_prefetch=0,
            grid=(G,),
            in_specs=[
                pl.BlockSpec((1, M, K), lambda g: (g, 0, 0)),
                pl.BlockSpec((K, Cp), lambda g: (0, 0)),
                pl.BlockSpec((1, Cp), lambda g: (0, 0)),
            ],
            out_specs=pl.BlockSpec((1, M, Cout), lambda g: (g, 0, 0)),
        ),
        compiler_params=pltpu.CompilerParams(
            dimension_semantics=("parallel",),
            vmem_limit_bytes=vmem_limit,
        ),
    )(x_cols, w_pad, b_pad)

    # ---- layout plumbing back: (G, M, Cout) -> (N, H, W, Cout) -> NCHW f32.
    out = out.reshape(N, H, W, Cout).astype(jnp.float32)
    return jnp.transpose(out, (0, 3, 1, 2))                           # (N, Cout, H, W)


def reference_forward(x_nchw, w_oihw, gamma, beta, running_mean, running_var, eps=1e-5):
    """Pure-JAX reference matching the kernel's bf16-operand / f32-accumulate math."""
    scale = gamma / jnp.sqrt(running_var + eps)
    bias = beta - running_mean * scale
    w_eff = (w_oihw * scale[:, None, None, None]).astype(jnp.bfloat16).astype(jnp.float32)
    x32 = x_nchw.astype(jnp.bfloat16).astype(jnp.float32)
    y = lax.conv_general_dilated(
        x32, w_eff, window_strides=(1, 1), padding=((1, 1), (1, 1)),
        dimension_numbers=("NCHW", "OIHW", "NCHW"),
        precision=lax.Precision.HIGHEST)
    y = y + bias[None, :, None, None]
    return jnp.maximum(y, 0.0)


if __name__ == "__main__":
    key = jax.random.PRNGKey(0)
    k_x, k_w, k_g, k_b = jax.random.split(key, 4)

    N, Cin, H, W = 2, 4, 16, 16
    Cout = 8

    x = jax.random.normal(k_x, (N, Cin, H, W), dtype=jnp.float32)
    # Conv2d weight [out_c, in_c, 3, 3], bias=False.
    w = 0.1 * jax.random.normal(k_w, (Cout, Cin, 3, 3), dtype=jnp.float32)
    # BatchNorm2d params (eval mode; running stats at PyTorch defaults).
    gamma = 1.0 + 0.05 * jax.random.normal(k_g, (Cout,), dtype=jnp.float32)
    beta = 0.05 * jax.random.normal(k_b, (Cout,), dtype=jnp.float32)
    running_mean = jnp.zeros((Cout,), dtype=jnp.float32)
    running_var = jnp.ones((Cout,), dtype=jnp.float32)

    out = ssm_block_forward(x, w, gamma, beta, running_mean, running_var)
    out = jax.block_until_ready(out)

    ref = reference_forward(x, w, gamma, beta, running_mean, running_var)
    assert out.shape == (N, Cout, H, W)
    err = float(jnp.max(jnp.abs(out - ref)))
    # Kernel output is bf16 (per perf review); allow bf16 rounding of O(1) values.
    assert err < 2e-2, err

    print("KERNEL_OK")
</pallas_src>

<mosaic_0001>
module attributes {stable_mosaic.version = 11 : i64} {
  func.func @_ssm_block_kernel(%arg0: i32, %arg1: memref<1x256x36xbf16, #tpu.memory_space<vmem>>, %arg2: memref<36x128xbf16, #tpu.memory_space<vmem>>, %arg3: memref<1x128xf32, #tpu.memory_space<vmem>>, %arg4: memref<1x256x8xbf16, #tpu.memory_space<vmem>>) attributes {dimension_semantics = [#tpu.dimension_semantics<parallel>], iteration_bounds = array<i64: 2>, scalar_prefetch = 0 : i64, scratch_operands = 0 : i64, tpu.core_type = #tpu.core_type<tc>, window_params = [{transform_indices = @transform_0, window_bounds = array<i64: 1, 256, 36>}, {pipeline_mode = #tpu.pipeline_mode<synchronous>, transform_indices = @transform_1, window_bounds = array<i64: 36, 128>}, {pipeline_mode = #tpu.pipeline_mode<synchronous>, transform_indices = @transform_2, window_bounds = array<i64: 1, 128>}, {transform_indices = @transform_3, window_bounds = array<i64: 1, 256, 8>}]} {
    %c0 = arith.constant 0 : index
    %c0_0 = arith.constant 0 : index
    %c0_1 = arith.constant 0 : index
    %0 = vector.load %arg1[%c0, %c0_0, %c0_1] : memref<1x256x36xbf16, #tpu.memory_space<vmem>>, vector<1x256x36xbf16>
    %1 = vector.shape_cast %0 : vector<1x256x36xbf16> to vector<256x36xbf16>
    %c0_2 = arith.constant 0 : index
    %c0_3 = arith.constant 0 : index
    %2 = vector.load %arg2[%c0_2, %c0_3] : memref<36x128xbf16, #tpu.memory_space<vmem>>, vector<36x128xbf16>
    %cst = arith.constant dense<0.000000e+00> : vector<256x128xf32>
    %3 = tpu.matmul %1, %2, %cst {dimension_numbers = #tpu.dot_dimension_numbers<[1], [0], [0], [1], [0, 0, 1, 1], [], []>} : vector<256x36xbf16>, vector<36x128xbf16>, vector<256x128xf32> -> vector<256x128xf32>
    %c0_4 = arith.constant 0 : index
    %c0_5 = arith.constant 0 : index
    %4 = vector.load %arg3[%c0_4, %c0_5] : memref<1x128xf32, #tpu.memory_space<vmem>>, vector<1x128xf32>
    %5 = vector.broadcast %4 : vector<1x128xf32> to vector<256x128xf32>
    %6 = arith.addf %3, %5 : vector<256x128xf32>
    %cst_6 = arith.constant 0.000000e+00 : f32
    %7 = vector.broadcast %cst_6 : f32 to vector<256x128xf32>
    %8 = arith.maximumf %6, %7 : vector<256x128xf32>
    %9 = vector.extract_strided_slice %8 {offsets = [0, 0], sizes = [256, 8], strides = [1, 1]} : vector<256x128xf32> to vector<256x8xf32>
    %10 = arith.truncf %9 : vector<256x8xf32> to vector<256x8xbf16>
    %c0_7 = arith.constant 0 : index
    %c0_8 = arith.constant 0 : index
    %c0_9 = arith.constant 0 : index
    %11 = vector.load %arg4[%c0_7, %c0_8, %c0_9] : memref<1x256x8xbf16, #tpu.memory_space<vmem>>, vector<1x256x8xbf16>
    %12 = vector.shape_cast %11 : vector<1x256x8xbf16> to vector<256x8xbf16>
    %13 = vector.shape_cast %10 : vector<256x8xbf16> to vector<1x256x8xbf16>
    tpu.vector_store %arg4[%c0_7, %c0_8, %c0_9], %13 {strides = array<i32>} : memref<1x256x8xbf16, #tpu.memory_space<vmem>>, vector<1x256x8xbf16>,
    return
  }
  func.func @transform_0(%arg0: i32) -> (i32, i32, i32) {
    %c0_i32 = arith.constant 0 : i32
    %c0_i32_0 = arith.constant 0 : i32
    %c0_i32_1 = arith.constant 0 : i32
    return %arg0, %c0_i32, %c0_i32_0 : i32, i32, i32
  }
  func.func @transform_1(%arg0: i32) -> (i32, i32) {
    %c0_i32 = arith.constant 0 : i32
    %c0_i32_0 = arith.constant 0 : i32
    %c0_i32_1 = arith.constant 0 : i32
    return %c0_i32, %c0_i32_0 : i32, i32
  }
  func.func @transform_2(%arg0: i32) -> (i32, i32) {
    %c0_i32 = arith.constant 0 : i32
    %c0_i32_0 = arith.constant 0 : i32
    %c0_i32_1 = arith.constant 0 : i32
    return %c0_i32, %c0_i32_0 : i32, i32
  }
  func.func @transform_3(%arg0: i32) -> (i32, i32, i32) {
    %c0_i32 = arith.constant 0 : i32
    %c0_i32_0 = arith.constant 0 : i32
    %c0_i32_1 = arith.constant 0 : i32
    return %arg0, %c0_i32, %c0_i32_0 : i32, i32, i32
  }
}

</mosaic_0001>

<llo_original>
// kernel: tpu_custom_call.1
$region0: #{tpu_custom_call.1}
  #allocation0 [shape = 'u32[]', space=smem, size = 0x4, offset = 0x4, fixed_abs, tag = 'smem constant byte address 0x4 - core index']
  #allocation1 [shape = 'u32[72,128]{1,0:T(1,128)}', space=vmem, size = 0x9000, scoped, tag = 'internal scratch']
  %s0 = inlined_call_operand.vmem [shape: bf16[2,256,36], index: 0, kind: input, shape index: {}]
  %s1 = inlined_call_operand.vmem [shape: bf16[36,128], index: 1, kind: input, shape index: {}]
  %s2 = inlined_call_operand.vmem [shape: f32[1,128], index: 2, kind: input, shape index: {}]
  %s3 = inlined_call_operand.vmem [shape: bf16[2,256,8], index: 3, kind: output, shape index: {}]
  %s4 = sld [smem:[#allocation0]]
  $region45: #{tpu_custom_call.1} parent=0
    _
  %s6 = ssub.s32 1, %s4
  %s7 = scalar_select 0, %s6, %s4
  loop: start=0, step=1, limit=4
  $region2: #{tpu_custom_call.1} parent=0 // loop_pre_header
    _
  $region3: #{tpu_custom_call.1} parent=0 // loop_header
    %s9 = sphi 0, %s13
    %p10 = scmp.ge.s32.totalorder %s9, 4
    %s19 = sphi 0, %s21
    %s22 = sphi 0, %s19
    %s23 = sphi 0, %s22
    %s39 = sphi 0, %s23
    %s43 = sphi 0, %s43
    %s45 = sphi 0, %s43
    %s46 = sphi 0, %s45
    %s60 = sphi 0, %s46
    %s64 = sphi 0, %s64
    %s66 = sphi 0, %s64
    %s67 = sphi 0, %s66
    %s81 = sphi 0, %s67
    %s87 = sphi 0, %s89
    %s90 = sphi 0, %s87
    %s91 = sphi 0, %s90
    %s107 = sphi 0, %s91
  $region4: #{tpu_custom_call.1} parent=0 // loop_header_branch
    %12 = sbr.rel (%p10) target = $region8
  $region5: #{tpu_custom_call.1} parent=0 // loop_body
    %s14 = ssub.s32 %s9, 1
    %s15 = ssub.s32 %s9, 2
    %s16 = sadd.s32 %s9, 1
    %s17 = ssub.s32 %s9, %s16
    %p18 = scmp.eq.s32.totalorder %s17, 0
    %s20 = sadd.s32 %s19, 1
    %s21 = scalar_select %p18, %s19, %s20
    %p24 = pneg %p18
    %p25 = scmp.eq.s32.totalorder %s9, 1
    %p26 = por %p24, %p25
    %p27 = scmp.ne.s32.totalorder %s19, %s22
    %p28 = scmp.eq.s32.totalorder %s9, 0
    %p29 = por %p27, %p28
    %p30 = scmp.ne.s32.totalorder %s19, %s22
    %p31 = scmp.eq.s32.totalorder %s14, 1
    %p32 = por %p30, %p31
    %p33 = scmp.ne.s32.totalorder %s22, %s23
    %p34 = scmp.eq.s32.totalorder %s14, 0
    %p35 = por %p33, %p34
    %p36 = scmp.ne.s32.totalorder %s22, %s23
    %p37 = scmp.eq.s32.totalorder %s15, 1
    %p38 = por %p36, %p37
    %p40 = scmp.ne.s32.totalorder %s23, %s39
    %p41 = scmp.eq.s32.totalorder %s15, 0
    %p42 = por %p40, %p41
    %s44 = sadd.s32 %s43, 1
    %p47 = scmp.eq.s32.totalorder %s9, 1
    %p48 = scmp.ne.s32.totalorder %s43, %s45
    %p49 = scmp.eq.s32.totalorder %s9, 0
    %p50 = por %p48, %p49
    %p51 = scmp.ne.s32.totalorder %s43, %s45
    %p52 = scmp.eq.s32.totalorder %s14, 1
    %p53 = por %p51, %p52
    %p54 = scmp.ne.s32.totalorder %s45, %s46
    %p55 = scmp.eq.s32.totalorder %s14, 0
    %p56 = por %p54, %p55
    %p57 = scmp.ne.s32.totalorder %s45, %s46
    %p58 = scmp.eq.s32.totalorder %s15, 1
    %p59 = por %p57, %p58
    %p61 = scmp.ne.s32.totalorder %s46, %s60
    %p62 = scmp.eq.s32.totalorder %s15, 0
    %p63 = por %p61, %p62
    %s65 = sadd.s32 %s64, 1
    %p68 = scmp.eq.s32.totalorder %s9, 1
    %p69 = scmp.ne.s32.totalorder %s64, %s66
    %p70 = scmp.eq.s32.totalorder %s9, 0
    %p71 = por %p69, %p70
    %p72 = scmp.ne.s32.totalorder %s64, %s66
    %p73 = scmp.eq.s32.totalorder %s14, 1
    %p74 = por %p72, %p73
    %p75 = scmp.ne.s32.totalorder %s66, %s67
    %p76 = scmp.eq.s32.totalorder %s14, 0
    %p77 = por %p75, %p76
    %p78 = scmp.ne.s32.totalorder %s66, %s67
    %p79 = scmp.eq.s32.totalorder %s15, 1
    %p80 = por %p78, %p79
    %p82 = scmp.ne.s32.totalorder %s67, %s81
    %p83 = scmp.eq.s32.totalorder %s15, 0
    %p84 = por %p82, %p83
    %s85 = ssub.s32 %s9, %s16
    %p86 = scmp.eq.s32.totalorder %s85, 0
    %s88 = sadd.s32 %s87, 1
    %s89 = scalar_select %p86, %s87, %s88
    %p92 = pneg %p86
    %p93 = scmp.eq.s32.totalorder %s9, 1
    %p94 = por %p92, %p93
    %p95 = scmp.ne.s32.totalorder %s87, %s90
    %p96 = scmp.eq.s32.totalorder %s9, 0
    %p97 = por %p95, %p96
    %p98 = scmp.ne.s32.totalorder %s87, %s90
    %p99 = scmp.eq.s32.totalorder %s14, 1
    %p100 = por %p98, %p99
    %p101 = scmp.ne.s32.totalorder %s90, %s91
    %p102 = scmp.eq.s32.totalorder %s14, 0
    %p103 = por %p101, %p102
    %p104 = scmp.ne.s32.totalorder %s90, %s91
    %p105 = scmp.eq.s32.totalorder %s15, 1
    %p106 = por %p104, %p105
    %p108 = scmp.ne.s32.totalorder %s91, %s107
    %p109 = scmp.eq.s32.totalorder %s15, 0
    %p110 = por %p108, %p109
    %p111 = scmp.le.s32.totalorder 1, %s9
    %p112 = scmp.lt.s32.totalorder %s9, 3
    %p113 = pnand %p111, %p112
    %p114 = pneg %p113
    // Predicated region
    $region9: #{tpu_custom_call.1} parent=5 // pred_check
      _
    $region10: #{tpu_custom_call.1} parent=5 // pred_check_branch
      %116 = sbr.rel (%p113) target = $region12
    $region11: #{tpu_custom_call.1} parent=5 // pred_region
      %s117 = ssub.s32 %s9, 1
      // Predicated region
      $region13: #{tpu_custom_call.1} parent=11 // pred_check
        %p118 = pneg %p56
      $region14: #{tpu_custom_call.1} parent=11 // pred_check_branch
        %120 = sbr.rel (%p118) target = $region16
      $region15: #{tpu_custom_call.1} parent=11 // pred_region
        _
      $region16: #{tpu_custom_call.1} parent=11 // pred_fallthru
        _
      // Predicated region
      $region17: #{tpu_custom_call.1} parent=11 // pred_check
        %p121 = pneg %p77
      $region18: #{tpu_custom_call.1} parent=11 // pred_check_branch
        %123 = sbr.rel (%p121) target = $region20
      $region19: #{tpu_custom_call.1} parent=11 // pred_region
        _
      $region20: #{tpu_custom_call.1} parent=11 // pred_fallthru
        _
    $region12: #{tpu_custom_call.1} parent=5 // pred_fallthru
      _
    %p124 = scmp.lt.s32.totalorder %s9, 2
    // Predicated region
    $region21: #{tpu_custom_call.1} parent=5 // pred_check
      %p125 = pneg %p124
    $region22: #{tpu_custom_call.1} parent=5 // pred_check_branch
      %127 = sbr.rel (%p125) target = $region24
    $region23: #{tpu_custom_call.1} parent=5 // pred_region
      // Predicated region
      $region25: #{tpu_custom_call.1} parent=23 // pred_check
        %p128 = pneg %p29
      $region26: #{tpu_custom_call.1} parent=23 // pred_check_branch
        %130 = sbr.rel (%p128) target = $region28
      $region27: #{tpu_custom_call.1} parent=23 // pred_region
        %p131 = scmp.lt.s32.totalorder %s9, 1
        %s132 = scalar_select %p131, %s9, 1
        %s133 = smul.addr %s132, 32
        %s134 = smul.addr %s133, 4
        %s135 = scalar_lea.vmem %s0, %s134
      $region28: #{tpu_custom_call.1} parent=23 // pred_fallthru
        _
    $region24: #{tpu_custom_call.1} parent=5 // pred_fallthru
      _
    %p136 = scmp.le.s32.totalorder 1, %s9
    %p137 = scmp.lt.s32.totalorder %s9, 3
    %p138 = pnand %p136, %p137
    %p139 = pneg %p138
    // Predicated region
    $region29: #{tpu_custom_call.1} parent=5 // pred_check
      _
    $region30: #{tpu_custom_call.1} parent=5 // pred_check_branch
      %141 = sbr.rel (%p138) target = $region32
    $region31: #{tpu_custom_call.1} parent=5 // pred_region
      %s142 = ssub.s32 %s9, 1
      %p143 = scmp.lt.s32.totalorder %s14, 1
      %s144 = scalar_select %p143, %s14, 1
      %s145 = smul.addr %s144, 32
      %s146 = smul.addr %s145, 4
      %s147 = scalar_lea.vmem %s0, %s146
      %p148 = pneg %p35
      %p149 = pneg %p32
      %p150 = pneg %p56
      %p151 = pneg %p53
      %p152 = pneg %p77
      %p153 = pneg %p74
      %p154 = pneg %p103
      %p155 = pneg %p100
      %p156 = scmp.lt.s32.totalorder %s14, 1
      %s157 = scalar_select %p156, %s14, 1
      %s158 = smul.addr %s157, 32
      %s159 = smul.addr %s158, 4
      %s160 = scalar_lea.vmem %s3, %s159
      %p161 = scmp.lt.s32.totalorder %s14, 1
      %s162 = scalar_select %p161, %s14, 1
      %s163 = smul.addr %s162, 32
      %s164 = smul.addr %s163, 4
      %s165 = scalar_lea.vmem %s0, %s164
      %p166 = scmp.lt.s32.totalorder %s14, 1
      %s167 = scalar_select %p166, %s14, 1
      %s168 = smul.addr %s167, 32
      %s169 = smul.addr %s168, 4
      %s170 = scalar_lea.vmem %s3, %s169
      %v172 = vld [vmem:[%s165] sm:$0xf]
      %v173 = vld [vmem:[%s165 + $0x4] sm:$0xf]
      %v174 = vld [vmem:[%s165 + $0x8] sm:$0xf]
      %v175 = vld [vmem:[%s165 + $0xc] sm:$0xf]
      %v176 = vld [vmem:[%s165 + $0x10] sm:$0xf]
      %v177 = vld [vmem:[%s165 + $0x14] sm:$0xf]
      %v178 = vld [vmem:[%s165 + $0x18] sm:$0xf]
      %v179 = vld [vmem:[%s165 + $0x1c] sm:$0xf]
      %v180 = vld [vmem:[%s165 + $0x20] sm:$0xf]
      %v181 = vld [vmem:[%s165 + $0x24] sm:$0xf]
      %v182 = vld [vmem:[%s165 + $0x28] sm:$0xf]
      %v183 = vld [vmem:[%s165 + $0x2c] sm:$0xf]
      %v184 = vld [vmem:[%s165 + $0x30] sm:$0xf]
      %v185 = vld [vmem:[%s165 + $0x34] sm:$0xf]
      %v186 = vld [vmem:[%s165 + $0x38] sm:$0xf]
      %v187 = vld [vmem:[%s165 + $0x3c] sm:$0xf]
      %v188 = vld [vmem:[%s165 + $0x40] sm:$0xf]
      %v189 = vld [vmem:[%s165 + $0x44] sm:$0xf]
      %v190 = vld [vmem:[%s165 + $0x48] sm:$0xf]
      %v191 = vld [vmem:[%s165 + $0x4c] sm:$0xf]
      %v192 = vld [vmem:[%s165 + $0x50] sm:$0xf]
      %v193 = vld [vmem:[%s165 + $0x54] sm:$0xf]
      %v194 = vld [vmem:[%s165 + $0x58] sm:$0xf]
      %v195 = vld [vmem:[%s165 + $0x5c] sm:$0xf]
      %v196 = vld [vmem:[%s165 + $0x60] sm:$0xf]
      %v197 = vld [vmem:[%s165 + $0x64] sm:$0xf]
      %v198 = vld [vmem:[%s165 + $0x68] sm:$0xf]
      %v199 = vld [vmem:[%s165 + $0x6c] sm:$0xf]
      %v200 = vld [vmem:[%s165 + $0x70] sm:$0xf]
      %v201 = vld [vmem:[%s165 + $0x74] sm:$0xf]
      %v202 = vld [vmem:[%s165 + $0x78] sm:$0xf]
      %v203 = vld [vmem:[%s165 + $0x7c] sm:$0xf]
      %v204 = vld [vmem:[%s1] sm:$0xf]
      %v205 = vld [vmem:[%s1 + $0x4] sm:$0xf]
      %v206 = vld [vmem:[%s1 + $0x8] sm:$0xf]
      %v207 = vld [vmem:[%s1 + $0xc] sm:$0xf]
      %v208 = vld [vmem:[%s1 + $0x10] sm:$0x3]
      %v209 = vld [vmem:[%s2] sm:$0x1]
      %v211 = vperm.slane %v209, 0
      %v245 = vunpack.c.l.b16 %v172
      %v246 = vunpack.c.l.b16 %v173
      %v247 = vunpack.c.l.b16 %v174
      %v248 = vunpack.c.l.b16 %v175
      %v249 = vunpack.c.l.b16 %v176
      %v250 = vunpack.c.l.b16 %v177
      %v251 = vunpack.c.l.b16 %v178
      %v252 = vunpack.c.l.b16 %v179
      %v253 = vunpack.c.l.b16 %v180
      %v254 = vunpack.c.l.b16 %v181
      %v255 = vunpack.c.l.b16 %v182
      %v256 = vunpack.c.l.b16 %v183
      %v257 = vunpack.c.l.b16 %v184
      %v258 = vunpack.c.l.b16 %v185
      %v259 = vunpack.c.l.b16 %v186
      %v260 = vunpack.c.l.b16 %v187
      %v261 = vunpack.c.l.b16 %v188
      %v262 = vunpack.c.l.b16 %v189
      %v263 = vunpack.c.l.b16 %v190
      %v264 = vunpack.c.l.b16 %v191
      %v265 = vunpack.c.l.b16 %v192
      %v266 = vunpack.c.l.b16 %v193
      %v267 = vunpack.c.l.b16 %v194
      %v268 = vunpack.c.l.b16 %v195
      %v269 = vunpack.c.l.b16 %v196
      %v270 = vunpack.c.l.b16 %v197
      %v271 = vunpack.c.l.b16 %v198
      %v272 = vunpack.c.l.b16 %v199
      %v273 = vunpack.c.l.b16 %v200
      %v274 = vunpack.c.l.b16 %v201
      %v275 = vunpack.c.l.b16 %v202
      %v276 = vunpack.c.l.b16 %v203
      %v277 = vpack.c.b16 %v246, %v245
      %v278 = vpack.c.b16 %v248, %v247
      %v279 = vpack.c.b16 %v250, %v249
      %v280 = vpack.c.b16 %v252, %v251
      %v281 = vpack.c.b16 %v254, %v253
      %v282 = vpack.c.b16 %v256, %v255
      %v283 = vpack.c.b16 %v258, %v257
      %v284 = vpack.c.b16 %v260, %v259
      %v285 = vpack.c.b16 %v262, %v261
      %v286 = vpack.c.b16 %v264, %v263
      %v287 = vpack.c.b16 %v266, %v265
      %v288 = vpack.c.b16 %v268, %v267
      %v289 = vpack.c.b16 %v270, %v269
      %v290 = vpack.c.b16 %v272, %v271
      %v291 = vpack.c.b16 %v274, %v273
      %v292 = vpack.c.b16 %v276, %v275
      %v298 = vunpack.c.l.b16 %v204
      %v299 = vunpack.c.l.b16 %v205
      %v300 = vunpack.c.l.b16 %v206
      %v301 = vunpack.c.l.b16 %v207
      %v302 = vunpack.c.l.b16 %v208
      %v303 = vpack.c.b16 %v299, %v298
      %v304 = vpack.c.b16 %v301, %v300
      %v305 = vpack.c.b16 %v302, %v302
      %vm308 = vcmask 293888
      %v310 = vsel %vm308, %v277, 0
      %v313 = vsel %vm308, %v278, 0
      %v316 = vsel %vm308, %v279, 0
      %v319 = vsel %vm308, %v280, 0
      %v322 = vsel %vm308, %v281, 0
      %v325 = vsel %vm308, %v282, 0
      %v328 = vsel %vm308, %v283, 0
      %v331 = vsel %vm308, %v284, 0
      %v334 = vsel %vm308, %v285, 0
      %v337 = vsel %vm308, %v286, 0
      %v340 = vsel %vm308, %v287, 0
      %v343 = vsel %vm308, %v288, 0
      %v346 = vsel %vm308, %v289, 0
      %v349 = vsel %vm308, %v290, 0
      %v352 = vsel %vm308, %v291, 0
      %v355 = vsel %vm308, %v292, 0
      %vm357 = vcmask 1041408
      %v359 = vsel %vm357, %v305, 0
      %361 = vmatpush.bf16.msra.mxu0 0
      %362 = vmatpush.bf16.msra.mxu0 0
      %363 = vmatpush.bf16.msra.mxu0 0
      %364 = vmatpush.bf16.msra.mxu0 0
      %365 = vmatpush.bf16.msra.mxu0 0
      %366 = vmatpush.bf16.msra.mxu0 %v359
      %367 = vmatpush.bf16.msra.mxu0 %v304
      %368 = vmatpush.bf16.msra.mxu0 %v303
      %369 = vmatmul.bf16.gmra.mxu0 %v310
      %v370 = vpop.f32.mrf.mxu0
      %v371 = vadd.f32 %v211, %v370
      %v372 = vpop.f32.mrf.mxu0
      %v373 = vadd.f32 %v211, %v372
      %374 = vmatmul.bf16.gmra.mxu0 %v313
      %v375 = vpop.f32.mrf.mxu0
      %v376 = vadd.f32 %v211, %v375
      %v377 = vpop.f32.mrf.mxu0
      %v378 = vadd.f32 %v211, %v377
      %379 = vmatmul.bf16.gmra.mxu0 %v316
      %v380 = vpop.f32.mrf.mxu0
      %v381 = vadd.f32 %v211, %v380
      %v382 = vpop.f32.mrf.mxu0
      %v383 = vadd.f32 %v211, %v382
      %384 = vmatmul.bf16.gmra.mxu0 %v319
      %v385 = vpop.f32.mrf.mxu0
      %v386 = vadd.f32 %v211, %v385
      %v387 = vpop.f32.mrf.mxu0
      %v388 = vadd.f32 %v211, %v387
      %389 = vmatmul.bf16.gmra.mxu0 %v322
      %v390 = vpop.f32.mrf.mxu0
      %v391 = vadd.f32 %v211, %v390
      %v392 = vpop.f32.mrf.mxu0
      %v393 = vadd.f32 %v211, %v392
      %394 = vmatmul.bf16.gmra.mxu0 %v325
      %v395 = vpop.f32.mrf.mxu0
      %v396 = vadd.f32 %v211, %v395
      %v397 = vpop.f32.mrf.mxu0
      %v398 = vadd.f32 %v211, %v397
      %399 = vmatmul.bf16.gmra.mxu0 %v328
      %v400 = vpop.f32.mrf.mxu0
      %v401 = vadd.f32 %v211, %v400
      %v402 = vpop.f32.mrf.mxu0
      %v403 = vadd.f32 %v211, %v402
      %404 = vmatmul.bf16.gmra.mxu0 %v331
      %v405 = vpop.f32.mrf.mxu0
      %v406 = vadd.f32 %v211, %v405
      %v407 = vpop.f32.mrf.mxu0
      %v408 = vadd.f32 %v211, %v407
      %409 = vmatmul.bf16.gmra.mxu0 %v334
      %v410 = vpop.f32.mrf.mxu0
      %v411 = vadd.f32 %v211, %v410
      %v412 = vpop.f32.mrf.mxu0
      %v413 = vadd.f32 %v211, %v412
      %414 = vmatmul.bf16.gmra.mxu0 %v337
      %v415 = vpop.f32.mrf.mxu0
      %v416 = vadd.f32 %v211, %v415
      %v417 = vpop.f32.mrf.mxu0
      %v418 = vadd.f32 %v211, %v417
      %419 = vmatmul.bf16.gmra.mxu0 %v340
      %v420 = vpop.f32.mrf.mxu0
      %v421 = vadd.f32 %v211, %v420
      %v422 = vpop.f32.mrf.mxu0
      %v423 = vadd.f32 %v211, %v422
      %424 = vmatmul.bf16.gmra.mxu0 %v343
      %v425 = vpop.f32.mrf.mxu0
      %v426 = vadd.f32 %v211, %v425
      %v427 = vpop.f32.mrf.mxu0
      %v428 = vadd.f32 %v211, %v427
      %429 = vmatmul.bf16.gmra.mxu0 %v346
      %v430 = vpop.f32.mrf.mxu0
      %v431 = vadd.f32 %v211, %v430
      %v432 = vpop.f32.mrf.mxu0
      %v433 = vadd.f32 %v211, %v432
      %434 = vmatmul.bf16.gmra.mxu0 %v349
      %v435 = vpop.f32.mrf.mxu0
      %v436 = vadd.f32 %v211, %v435
      %v437 = vpop.f32.mrf.mxu0
      %v438 = vadd.f32 %v211, %v437
      %439 = vmatmul.bf16.gmra.mxu0 %v352
      %v440 = vpop.f32.mrf.mxu0
      %v441 = vadd.f32 %v211, %v440
      %v442 = vpop.f32.mrf.mxu0
      %v443 = vadd.f32 %v211, %v442
      %444 = vmatmul.bf16.gmra.mxu0 %v355
      %v445 = vpop.f32.mrf.mxu0
      %v446 = vadd.f32 %v211, %v445
      %v447 = vpop.f32.mrf.mxu0
      %v448 = vadd.f32 %v211, %v447
      %449 = vdwg.mxu0
      %v450 = vmax.f32 %v371, 0.0
      %v451 = vmax.f32 %v373, 0.0
      %v452 = vmax.f32 %v376, 0.0
      %v453 = vmax.f32 %v378, 0.0
      %v454 = vmax.f32 %v381, 0.0
      %v455 = vmax.f32 %v383, 0.0
      %v456 = vmax.f32 %v386, 0.0
      %v457 = vmax.f32 %v388, 0.0
      %v458 = vmax.f32 %v391, 0.0
      %v459 = vmax.f32 %v393, 0.0
      %v460 = vmax.f32 %v396, 0.0
      %v461 = vmax.f32 %v398, 0.0
      %v462 = vmax.f32 %v401, 0.0
      %v463 = vmax.f32 %v403, 0.0
      %v464 = vmax.f32 %v406, 0.0
      %v465 = vmax.f32 %v408, 0.0
      %v466 = vmax.f32 %v411, 0.0
      %v467 = vmax.f32 %v413, 0.0
      %v468 = vmax.f32 %v416, 0.0
      %v469 = vmax.f32 %v418, 0.0
      %v470 = vmax.f32 %v421, 0.0
      %v471 = vmax.f32 %v423, 0.0
      %v472 = vmax.f32 %v426, 0.0
      %v473 = vmax.f32 %v428, 0.0
      %v474 = vmax.f32 %v431, 0.0
      %v475 = vmax.f32 %v433, 0.0
      %v476 = vmax.f32 %v436, 0.0
      %v477 = vmax.f32 %v438, 0.0
      %v478 = vmax.f32 %v441, 0.0
      %v479 = vmax.f32 %v443, 0.0
      %v480 = vmax.f32 %v446, 0.0
      %v481 = vmax.f32 %v448, 0.0
      %v482 = vpack.c.bf16 %v450, %v450
      %v483 = vpack.c.bf16 %v451, %v451
      %v484 = vpack.c.bf16 %v452, %v452
      %v485 = vpack.c.bf16 %v453, %v453
      %v486 = vpack.c.bf16 %v454, %v454
      %v487 = vpack.c.bf16 %v455, %v455
      %v488 = vpack.c.bf16 %v456, %v456
      %v489 = vpack.c.bf16 %v457, %v457
      %v490 = vpack.c.bf16 %v458, %v458
      %v491 = vpack.c.bf16 %v459, %v459
      %v492 = vpack.c.bf16 %v460, %v460
      %v493 = vpack.c.bf16 %v461, %v461
      %v494 = vpack.c.bf16 %v462, %v462
      %v495 = vpack.c.bf16 %v463, %v463
      %v496 = vpack.c.bf16 %v464, %v464
      %v497 = vpack.c.bf16 %v465, %v465
      %v498 = vpack.c.bf16 %v466, %v466
      %v499 = vpack.c.bf16 %v467, %v467
      %v500 = vpack.c.bf16 %v468, %v468
      %v501 = vpack.c.bf16 %v469, %v469
      %v502 = vpack.c.bf16 %v470, %v470
      %v503 = vpack.c.bf16 %v471, %v471
      %v504 = vpack.c.bf16 %v472, %v472
      %v505 = vpack.c.bf16 %v473, %v473
      %v506 = vpack.c.bf16 %v474, %v474
      %v507 = vpack.c.bf16 %v475, %v475
      %v508 = vpack.c.bf16 %v476, %v476
      %v509 = vpack.c.bf16 %v477, %v477
      %v510 = vpack.c.bf16 %v478, %v478
      %v511 = vpack.c.bf16 %v479, %v479
      %v512 = vpack.c.bf16 %v480, %v480
      %v513 = vpack.c.bf16 %v481, %v481
      %vm514 = vcmask 60416
      %515 = vst.msk [vmem:[%s170] sm:$0xf] %vm514, %v482
      %516 = vst.msk [vmem:[%s170 + $0x4] sm:$0xf] %vm514, %v483
      %517 = vst.msk [vmem:[%s170 + $0x8] sm:$0xf] %vm514, %v484
      %518 = vst.msk [vmem:[%s170 + $0xc] sm:$0xf] %vm514, %v485
      %519 = vst.msk [vmem:[%s170 + $0x10] sm:$0xf] %vm514, %v486
      %520 = vst.msk [vmem:[%s170 + $0x14] sm:$0xf] %vm514, %v487
      %521 = vst.msk [vmem:[%s170 + $0x18] sm:$0xf] %vm514, %v488
      %522 = vst.msk [vmem:[%s170 + $0x1c] sm:$0xf] %vm514, %v489
      %523 = vst.msk [vmem:[%s170 + $0x20] sm:$0xf] %vm514, %v490
      %524 = vst.msk [vmem:[%s170 + $0x24] sm:$0xf] %vm514, %v491
      %525 = vst.msk [vmem:[%s170 + $0x28] sm:$0xf] %vm514, %v492
      %526 = vst.msk [vmem:[%s170 + $0x2c] sm:$0xf] %vm514, %v493
      %527 = vst.msk [vmem:[%s170 + $0x30] sm:$0xf] %vm514, %v494
      %528 = vst.msk [vmem:[%s170 + $0x34] sm:$0xf] %vm514, %v495
      %529 = vst.msk [vmem:[%s170 + $0x38] sm:$0xf] %vm514, %v496
      %530 = vst.msk [vmem:[%s170 + $0x3c] sm:$0xf] %vm514, %v497
      %531 = vst.msk [vmem:[%s170 + $0x40] sm:$0xf] %vm514, %v498
      %532 = vst.msk [vmem:[%s170 + $0x44] sm:$0xf] %vm514, %v499
      %533 = vst.msk [vmem:[%s170 + $0x48] sm:$0xf] %vm514, %v500
      %534 = vst.msk [vmem:[%s170 + $0x4c] sm:$0xf] %vm514, %v501
      %535 = vst.msk [vmem:[%s170 + $0x50] sm:$0xf] %vm514, %v502
      %536 = vst.msk [vmem:[%s170 + $0x54] sm:$0xf] %vm514, %v503
      %537 = vst.msk [vmem:[%s170 + $0x58] sm:$0xf] %vm514, %v504
      %538 = vst.msk [vmem:[%s170 + $0x5c] sm:$0xf] %vm514, %v505
      %539 = vst.msk [vmem:[%s170 + $0x60] sm:$0xf] %vm514, %v506
      %540 = vst.msk [vmem:[%s170 + $0x64] sm:$0xf] %vm514, %v507
      %541 = vst.msk [vmem:[%s170 + $0x68] sm:$0xf] %vm514, %v508
      %542 = vst.msk [vmem:[%s170 + $0x6c] sm:$0xf] %vm514, %v509
      %543 = vst.msk [vmem:[%s170 + $0x70] sm:$0xf] %vm514, %v510
      %544 = vst.msk [vmem:[%s170 + $0x74] sm:$0xf] %vm514, %v511
      %545 = vst.msk [vmem:[%s170 + $0x78] sm:$0xf] %vm514, %v512
      %546 = vst.msk [vmem:[%s170 + $0x7c] sm:$0xf] %vm514, %v513
      %p547 = scmp.lt.s32.totalorder %s14, 1
      %s548 = scalar_select %p547, %s14, 1
      %s549 = smul.addr %s548, 32
      %s550 = smul.addr %s549, 4
      %s551 = scalar_lea.vmem %s3, %s550
      // Predicated region
      $region33: #{tpu_custom_call.1} parent=31 // pred_check
        %p552 = pneg %p100
      $region34: #{tpu_custom_call.1} parent=31 // pred_check_branch
        %554 = sbr.rel (%p552) target = $region36
      $region35: #{tpu_custom_call.1} parent=31 // pred_region
        _
      $region36: #{tpu_custom_call.1} parent=31 // pred_fallthru
        _
    $region32: #{tpu_custom_call.1} parent=5 // pred_fallthru
      _
    %p555 = scmp.le.s32.totalorder 2, %s9
    // Predicated region
    $region37: #{tpu_custom_call.1} parent=5 // pred_check
      %p556 = pneg %p555
    $region38: #{tpu_custom_call.1} parent=5 // pred_check_branch
      %558 = sbr.rel (%p556) target = $region40
    $region39: #{tpu_custom_call.1} parent=5 // pred_region
      %s559 = ssub.s32 %s9, 2
      // Predicated region
      $region41: #{tpu_custom_call.1} parent=39 // pred_check
        %p560 = pneg %p106
      $region42: #{tpu_custom_call.1} parent=39 // pred_check_branch
        %562 = sbr.rel (%p560) target = $region44
      $region43: #{tpu_custom_call.1} parent=39 // pred_region
        %p563 = scmp.lt.s32.totalorder %s15, 1
        %s564 = scalar_select %p563, %s15, 1
        %s565 = smul.addr %s564, 32
        %s566 = smul.addr %s565, 4
        %s567 = scalar_lea.vmem %s3, %s566
      $region44: #{tpu_custom_call.1} parent=39 // pred_fallthru
        _
    $region40: #{tpu_custom_call.1} parent=5 // pred_fallthru
      _
  $region6: #{tpu_custom_call.1} parent=0 // loop_footer
    %s13 = sadd.s32 1, %s9
  $region7: #{tpu_custom_call.1} parent=0 // loop_footer_branch
    %8 = sbr.rel target = $region3
  $region8: #{tpu_custom_call.1} parent=0 // loop_exit
    _

</llo_original>
